<compile_context>
chip_gen: v7x
topology: tpu7x:2x2x1
jax: 0.10.0
libtpu: 0.0.40
codegen_flags: <defaults>
</compile_context>

<pallas_src>
import math

import jax
import jax.numpy as jnp
from jax import lax
from jax.experimental import pallas as pl
from jax.experimental.pallas import tpu as pltpu


_EPS = 1e-12              # torch F.normalize default eps
_EPS_SQ = _EPS * _EPS     # rsqrt(max(sumsq, eps^2)) == 1 / max(norm, eps)


def _round_up(v: int, m: int) -> int:
    return (v + m - 1) // m * m


def _wnorm_kernel(w_ref, o_ref):
    """Column-normalize one (D, TN) tile of W (F.normalize(W, dim=0))."""
    w = w_ref[...]
    col_ssq = jnp.sum(w * w, axis=0, keepdims=True)           # (1, TN)
    o_ref[...] = w * lax.rsqrt(jnp.maximum(col_ssq, _EPS_SQ))


def _make_arcnet_kernel(*, s: float, cos_m: float, sin_m: float,
                        C: int, TM: int, TN: int, C_pad: int):
    inv_s = 1.0 / s
    s_sin_m = s * sin_m
    need_mask = (C_pad != C)

    def kernel(x_ref, wn_ref, o_ref, xn_sc, ecos_sc, rsum_sc):
        j = pl.program_id(1)

        @pl.when(j == 0)
        def _init():
            # Row-normalize this x tile once per row-tile (not per class-tile).
            x = x_ref[...]
            row_ssq = jnp.sum(x * x, axis=1, keepdims=True)
            xn_sc[...] = x * lax.rsqrt(jnp.maximum(row_ssq, _EPS_SQ))
            rsum_sc[...] = jnp.zeros_like(rsum_sc)

        # Unit rows (x) x unit cols (w)  =>  logits == s * cosa exactly,
        # with s = sqrt(N)*sqrt(C) folded in as a constant.
        logits = jnp.dot(xn_sc[...], wn_ref[...],
                         preferred_element_type=jnp.float32)   # (TM, TN)
        cosa = logits * inv_s
        sin_a = jnp.sqrt(jnp.maximum(1.0 - cosa * cosa, 0.0))
        # s*cos(a + m) = logits*cos(m) - (s*sin(m)) * sin(a)
        e_am = jnp.exp(logits * cos_m - s_sin_m * sin_a)        # exp(s*cos(a+m))
        e_cos = jnp.exp(logits)                                 # exp(s*cosa)

        if need_mask:
            # Padded class columns must not contribute to the row sum.
            col = j * TN + lax.broadcasted_iota(jnp.int32, (TM, TN), 1)
            e_cos = jnp.where(col < C, e_cos, 0.0)

        col0 = pl.multiple_of(j * TN, TN)
        cols = pl.ds(col0, TN)
        o_ref[:, cols] = e_am
        ecos_sc[:, cols] = e_cos
        rsum_sc[...] += jnp.sum(e_cos, axis=1, keepdims=True)

        @pl.when(j == pl.num_programs(1) - 1)
        def _finalize():
            e_am_all = o_ref[...]
            denom = rsum_sc[...] + e_am_all - ecos_sc[...]
            o_ref[...] = e_am_all * pl.reciprocal(denom, approx=True)

    return kernel


def arc_net_forward(feature: jax.Array, W: jax.Array, m: float = 1.0,
                    *, tile_m: int = 128, tile_n: int = 2048) -> jax.Array:
    """Pallas TPU implementation of Arc_Net.forward(feature, m)."""
    feature = jnp.asarray(feature, jnp.float32)
    W = jnp.asarray(W, jnp.float32)
    N, D = feature.shape
    Dw, C = W.shape
    assert D == Dw, "feature_dim mismatch between input and weight"

    # After normalization every row of x / column of w has unit norm, so the
    # Frobenius norms are sqrt(N) and sqrt(C) exactly (barring all-zero
    # rows/columns) -> s is a compile-time constant.
    s = math.sqrt(N) * math.sqrt(C)
    cos_m = float(math.cos(m))
    sin_m = float(math.sin(m))

    # Lane-dense (multiple-of-128) class tiles, sublane-aligned row tiles.
    TN = min(tile_n, _round_up(C, 128))
    C_pad = _round_up(C, TN)
    TM = min(tile_m, _round_up(N, 8))
    N_pad = _round_up(N, TM)

    W_p = W if C_pad == C else jnp.pad(W, ((0, 0), (0, C_pad - C)))
    x_p = feature if N_pad == N else jnp.pad(feature, ((0, N_pad - N), (0, 0)))

    # Pass 1: column-normalize W once (instead of once per row tile).
    w_n = pl.pallas_call(
        _wnorm_kernel,
        out_shape=jax.ShapeDtypeStruct((D, C_pad), jnp.float32),
        grid=(C_pad // TN,),
        in_specs=[pl.BlockSpec((D, TN), lambda j: (0, j))],
        out_specs=pl.BlockSpec((D, TN), lambda j: (0, j)),
        compiler_params=pltpu.CompilerParams(dimension_semantics=("parallel",)),
    )(W_p)

    # Pass 2: tiled matmul + margin transform + row-normalized output.
    kernel = _make_arcnet_kernel(s=s, cos_m=cos_m, sin_m=sin_m,
                                 C=C, TM=TM, TN=TN, C_pad=C_pad)

    vmem_est = 4 * (2 * TM * D + 2 * D * TN + 2 * TM * C_pad     # pipelined i/o
                    + TM * C_pad + TM * D + TM * 128)            # scratch
    vmem_limit = int(min(max(2 * vmem_est, 32 * 2**20), 64 * 2**20))

    out_p = pl.pallas_call(
        kernel,
        out_shape=jax.ShapeDtypeStruct((N_pad, C_pad), jnp.float32),
        grid=(N_pad // TM, C_pad // TN),
        in_specs=[
            pl.BlockSpec((TM, D), lambda i, j: (i, 0)),    # x row tile
            pl.BlockSpec((D, TN), lambda i, j: (0, j)),    # normalized W tile
        ],
        out_specs=pl.BlockSpec((TM, C_pad), lambda i, j: (i, 0)),  # resident slab
        scratch_shapes=[
            pltpu.VMEM((TM, D), jnp.float32),       # normalized x tile cache
            pltpu.VMEM((TM, C_pad), jnp.float32),   # exp(s*cosa) slab
            pltpu.VMEM((TM, 1), jnp.float32),       # per-row sum of exp(s*cosa)
        ],
        compiler_params=pltpu.CompilerParams(
            dimension_semantics=("parallel", "arbitrary"),
            vmem_limit_bytes=vmem_limit),
    )(x_p, w_n)

    return out_p[:N, :C]


def arc_net_reference(feature: jax.Array, W: jax.Array, m: float = 1.0) -> jax.Array:
    """Pure-JAX reference mirroring the PyTorch code exactly (for validation)."""
    eps = 1e-12
    x = feature / jnp.maximum(
        jnp.sqrt(jnp.sum(feature * feature, axis=1, keepdims=True)), eps)
    w = W / jnp.maximum(
        jnp.sqrt(jnp.sum(W * W, axis=0, keepdims=True)), eps)
    s = jnp.sqrt(jnp.sum(x * x)) * jnp.sqrt(jnp.sum(w * w))
    cosa = jnp.matmul(x, w) / s
    a = jnp.arccos(jnp.clip(cosa, -1.0, 1.0))
    e_am = jnp.exp(s * jnp.cos(a + m))
    e_cos = jnp.exp(s * cosa)
    return e_am / (jnp.sum(e_cos, axis=1, keepdims=True) - e_cos + e_am)


if __name__ == "__main__":
    # Module defaults: feature_dim=2, cls_dim=10; small batch.
    batch, feature_dim, cls_dim = 8, 2, 10

    key = jax.random.PRNGKey(0)
    k_feat, k_w = jax.random.split(key)
    feature = jax.random.normal(k_feat, (batch, feature_dim), dtype=jnp.float32)
    W = jax.random.normal(k_w, (feature_dim, cls_dim), dtype=jnp.float32)

    out = jax.block_until_ready(arc_net_forward(feature, W, m=1.0))
    ref = arc_net_reference(feature, W, m=1.0)

    assert out.shape == (batch, cls_dim)
    # approx reciprocal + analytic cos(a+m) identity -> compare with a relative
    # tolerance (values span ~1e-4..1e-1 here).
    assert bool(jnp.allclose(out, ref, rtol=1e-2, atol=1e-8)), "mismatch vs reference"

    print("KERNEL_OK")
</pallas_src>

<mosaic_0001>
module attributes {stable_mosaic.version = 11 : i64} {
  func.func @_wnorm_kernel(%arg0: i32, %arg1: memref<2x128xf32, #tpu.memory_space<vmem>>, %arg2: memref<2x128xf32, #tpu.memory_space<vmem>>) attributes {dimension_semantics = [#tpu.dimension_semantics<parallel>], iteration_bounds = array<i64: 1>, scalar_prefetch = 0 : i64, scratch_operands = 0 : i64, tpu.core_type = #tpu.core_type<tc>, window_params = [{transform_indices = @transform_0, window_bounds = array<i64: 2, 128>}, {transform_indices = @transform_1, window_bounds = array<i64: 2, 128>}]} {
    %c0 = arith.constant 0 : index
    %c0_0 = arith.constant 0 : index
    %0 = vector.load %arg1[%c0, %c0_0] : memref<2x128xf32, #tpu.memory_space<vmem>>, vector<2x128xf32>
    %1 = arith.mulf %0, %0 : vector<2x128xf32>
    %cst = arith.constant dense<0.000000e+00> : vector<128xf32>
    %2 = vector.multi_reduction <add>, %1, %cst [0] : vector<2x128xf32> to vector<128xf32>
    %3 = vector.shape_cast %2 : vector<128xf32> to vector<1x128xf32>
    %cst_1 = arith.constant 1.000000e-24 : f32
    %4 = vector.broadcast %cst_1 : f32 to vector<1x128xf32>
    %5 = arith.maximumf %3, %4 : vector<1x128xf32>
    %6 = math.rsqrt %5 : vector<1x128xf32>
    %7 = vector.broadcast %6 : vector<1x128xf32> to vector<2x128xf32>
    %8 = arith.mulf %0, %7 : vector<2x128xf32>
    %c0_2 = arith.constant 0 : index
    %c0_3 = arith.constant 0 : index
    %9 = vector.load %arg2[%c0_2, %c0_3] : memref<2x128xf32, #tpu.memory_space<vmem>>, vector<2x128xf32>
    tpu.vector_store %arg2[%c0_2, %c0_3], %8 {strides = array<i32>} : memref<2x128xf32, #tpu.memory_space<vmem>>, vector<2x128xf32>,
    return
  }
  func.func @transform_0(%arg0: i32) -> (i32, i32) {
    %c0_i32 = arith.constant 0 : i32
    %c0_i32_0 = arith.constant 0 : i32
    return %c0_i32, %arg0 : i32, i32
  }
  func.func @transform_1(%arg0: i32) -> (i32, i32) {
    %c0_i32 = arith.constant 0 : i32
    %c0_i32_0 = arith.constant 0 : i32
    return %c0_i32, %arg0 : i32, i32
  }
}

</mosaic_0001>

<llo_original>
// kernel: tpu_custom_call.1
$region0: #{tpu_custom_call.1}
  #allocation0 [shape = 'u32[]', space=smem, size = 0x4, offset = 0x4, fixed_abs, tag = 'smem constant byte address 0x4 - core index']
  #allocation1 [shape = 'u32[144,128]{1,0:T(1,128)}', space=vmem, size = 0x12000, scoped, tag = 'internal scratch']
  %s0 = inlined_call_operand.hbm [shape: f32[2,128], index: 0, kind: input, shape index: {}]
  %s1 = inlined_call_operand.hbm [shape: f32[2,128], index: 1, kind: output, shape index: {}]
  %s2 = sld [smem:[#allocation0]]
  $region18: #{tpu_custom_call.1} parent=0
    _
  %s4 = ssub.s32 1, %s2
  %s5 = scalar_select 0, %s4, %s2
  $region1: #{tpu_custom_call.1} parent=0
    #allocation2 [shape = 'u8[1024]{0}', space=vmem, size = 0x400, scoped, tag = 'input window, operand 0, single buffered']
    #allocation3 [shape = 's32[1]{0}', space=sflag, size = 0x4, scoped, tag = 'scoped memory for tpu_custom_call.1']
    #allocation4 [shape = 's32[1]{0}', space=sflag, size = 0x4, scoped, tag = 'scoped memory for tpu_custom_call.1']
    #allocation5 [shape = 'u8[1024]{0}', space=vmem, size = 0x400, scoped, tag = 'output window, operand 0, single buffered']
    %6 = vsyncpa [#allocation3], 0
    %7 = vsyncpa [#allocation4], 0
    // Predicated region
    $region2: #{tpu_custom_call.1} parent=1 // pred_check
      _
    $region3: #{tpu_custom_call.1} parent=1 // pred_check_branch
      %9 = sbr.rel (0) target = $region5
    $region4: #{tpu_custom_call.1} parent=1 // pred_region
      %s11 = ssub.s32 32, 32
      %12 = vsyncadd [#allocation3], %s11
      %s14 = sshll.u32 [#allocation2], 4
      %s15 = int_to_ptr.vmem [resolvable:$true] %s14
      %17 = dma.hbm_to_vmem [thread:$0]  %s0, 32, %s15, [#allocation3]
    $region5: #{tpu_custom_call.1} parent=1 // pred_fallthru
      _
    // Predicated region
    $region6: #{tpu_custom_call.1} parent=1 // pred_check
      _
    $region7: #{tpu_custom_call.1} parent=1 // pred_check_branch
      %19 = sbr.rel (0) target = $region9
    $region8: #{tpu_custom_call.1} parent=1 // pred_region
      %20 = dma.done [#allocation3], 32
    $region9: #{tpu_custom_call.1} parent=1 // pred_fallthru
      _
    %v21 = vld [vmem:[#allocation2] sm:$0x3]
    %v22 = vmul.f32 %v21, %v21
    %vm23 = vcmask 1041408
    %v24 = vsel %vm23, %v22, 0.0
    %v25 = vrot.slane %v24, 4
    %v26 = vadd.f32 %v24, %v25
    %v27 = vrot.slane %v26, 2
    %v28 = vadd.f32 %v26, %v27
    %v29 = vrot.slane %v28, 1
    %v30 = vadd.f32 %v28, %v29
    %v31 = vmax.f32 %v30, 1e-24
    %v32 = vrsqrt.pop %v31
    %v33 = vmul.f32 %v21, %v32
    %34 = vst [vmem:[#allocation5] sm:$0x3] %v33
    // Predicated region
    $region10: #{tpu_custom_call.1} parent=1 // pred_check
      _
    $region11: #{tpu_custom_call.1} parent=1 // pred_check_branch
      %36 = sbr.rel (0) target = $region13
    $region12: #{tpu_custom_call.1} parent=1 // pred_region
      %s38 = ssub.s32 32, 32
      %39 = vsyncadd [#allocation4], %s38
      %s41 = sshll.u32 [#allocation5], 4
      %s42 = int_to_ptr.vmem [resolvable:$true] %s41
      %44 = dma.vmem_to_hbm [thread:$0]  %s42, 32, %s1, [#allocation4]
    $region13: #{tpu_custom_call.1} parent=1 // pred_fallthru
      _
    // Predicated region
    $region14: #{tpu_custom_call.1} parent=1 // pred_check
      _
    $region15: #{tpu_custom_call.1} parent=1 // pred_check_branch
      %46 = sbr.rel (0) target = $region17
    $region16: #{tpu_custom_call.1} parent=1 // pred_region
      %47 = dma.done [#allocation4], 32
    $region17: #{tpu_custom_call.1} parent=1 // pred_fallthru
      _
    %48 = vsyncpa [#allocation3], 1
    %49 = vsyncpa [#allocation4], 1

</llo_original>
